<compile_context>
chip_gen: v7x
topology: tpu7x:2x2x1
jax: 0.10.0
libtpu: 0.0.40
codegen_flags: <defaults>
</compile_context>

<pallas_src>
import functools

import jax
import jax.numpy as jnp
from jax.experimental import pallas as pl
from jax.experimental.pallas import tpu as pltpu


# ---------------------------------------------------------------------------
# Helpers
# ---------------------------------------------------------------------------
def _pick_tile(n, rows, itemsize, budget_bytes=2 << 20):
    """Largest lane-aligned (multiple of 128) tile of the last dim that divides
    `n` and keeps one (rows, tile) block under `budget_bytes`, so the default
    double-buffering stays inside the scoped-VMEM limit on v5e/v6e/v7x."""
    for t in (8192, 4096, 2048, 1024, 512, 256, 128):
        if n % t == 0 and rows * t * itemsize <= budget_bytes:
            return t
    return n  # fall back to the full dim (allowed by the (8,128) rule)


# ---------------------------------------------------------------------------
# Kernels
# ---------------------------------------------------------------------------
def _logits_loss_kernel(ids_ref, logits_ref, out_ref, tgt_acc, nt_acc, *, threshold):
    # ids_ref: VMEM (B,1) int32 (resident); logits_ref: VMEM (B,TV) streaming tile.
    vi = pl.program_id(0)
    nv = pl.num_programs(0)

    @pl.when(vi == 0)
    def _():
        tgt_acc[...] = jnp.full_like(tgt_acc, -jnp.inf)
        nt_acc[...] = jnp.full_like(nt_acc, -jnp.inf)

    logits = logits_ref[...]                                     # native dtype (B, TV)
    B, TV = logits.shape
    col = jax.lax.broadcasted_iota(jnp.int32, (B, TV), 1) + vi * TV
    tgt_mask = col == ids_ref[...]                               # (B,TV) vs (B,1) broadcast
    neg = jnp.array(-jnp.inf, dtype=logits.dtype)
    # Single traversal of the tile: two lane-reductions in the storage dtype.
    t_tile = jnp.max(jnp.where(tgt_mask, logits, neg), axis=-1, keepdims=True)
    n_tile = jnp.max(jnp.where(tgt_mask, neg, logits), axis=-1, keepdims=True)
    tgt_acc[...] = jnp.maximum(tgt_acc[...], t_tile.astype(jnp.float32))
    nt_acc[...] = jnp.maximum(nt_acc[...], n_tile.astype(jnp.float32))

    @pl.when(vi == nv - 1)
    def _():
        loss = tgt_acc[...] - nt_acc[...]       # == -(max_non_target - target)
        if threshold is not None:
            loss = jnp.maximum(loss, jnp.float32(-threshold)) + jnp.float32(threshold)
        out_ref[0, 0] = jnp.sum(loss) / B


def _logits_loss_rand_kernel(ids_ref, rand_ref, logits_ref, out_ref,
                             tgt_acc, rnt_acc, *, threshold):
    # ids_ref / rand_ref: VMEM (B,1) int32; logits_ref: VMEM (B,TV) streaming tile.
    vi = pl.program_id(0)
    nv = pl.num_programs(0)

    @pl.when(vi == 0)
    def _():
        tgt_acc[...] = jnp.full_like(tgt_acc, -jnp.inf)
        rnt_acc[...] = jnp.full_like(rnt_acc, -jnp.inf)

    logits = logits_ref[...]
    B, TV = logits.shape
    col = jax.lax.broadcasted_iota(jnp.int32, (B, TV), 1) + vi * TV
    neg = jnp.array(-jnp.inf, dtype=logits.dtype)
    tgt_mask = col == ids_ref[...]
    rnd_mask = col == rand_ref[...]
    t_tile = jnp.max(jnp.where(tgt_mask, logits, neg), axis=-1, keepdims=True)
    r_tile = jnp.max(jnp.where(rnd_mask, logits, neg), axis=-1, keepdims=True)
    tgt_acc[...] = jnp.maximum(tgt_acc[...], t_tile.astype(jnp.float32))
    rnt_acc[...] = jnp.maximum(rnt_acc[...], r_tile.astype(jnp.float32))

    @pl.when(vi == nv - 1)
    def _():
        # Faithful to the PyTorch code: rand_non_target (B,1) minus target (B,)
        # broadcasts to (B,B): L[i,j] = -(rand_nt[i] - target[j]) = target[j]-rand_nt[i],
        # optionally clamped at -threshold, averaged over all B*B entries.
        tgt = tgt_acc[...]                                        # (B,1)
        rnt = rnt_acc[...]                                        # (B,1)
        if threshold is None:
            # mean_{i,j}(target[j] - rand_nt[i]) factorizes exactly.
            out_ref[0, 0] = (jnp.sum(tgt) - jnp.sum(rnt)) / B
        else:
            # Recover target as a (1,B) lane vector without a sublane->lane
            # transpose: masked diagonal + sublane reduction.
            eye = (jax.lax.broadcasted_iota(jnp.int32, (B, B), 0)
                   == jax.lax.broadcasted_iota(jnp.int32, (B, B), 1))
            tgt_diag = jnp.where(eye, jnp.broadcast_to(tgt, (B, B)), jnp.float32(0.0))
            tgt_row = jnp.sum(tgt_diag, axis=0, keepdims=True)    # (1,B): tgt_row[0,j]=tgt[j]
            pair = tgt_row - rnt                                  # (B,B)
            pair = jnp.maximum(pair, jnp.float32(-threshold))
            out_ref[0, 0] = jnp.sum(pair) / (B * B)


def _cosine_loss_kernel(x_ref, y_ref, out_ref, dot_acc, nx_acc, ny_acc, *, margin):
    di = pl.program_id(0)
    nd = pl.num_programs(0)

    @pl.when(di == 0)
    def _():
        dot_acc[...] = jnp.zeros_like(dot_acc)
        nx_acc[...] = jnp.zeros_like(nx_acc)
        ny_acc[...] = jnp.zeros_like(ny_acc)

    x = x_ref[...].astype(jnp.float32)                            # (B, TD)
    y = y_ref[...].astype(jnp.float32)
    dot_acc[...] += jnp.sum(x * y, axis=-1, keepdims=True)
    nx_acc[...] += jnp.sum(x * x, axis=-1, keepdims=True)
    ny_acc[...] += jnp.sum(y * y, axis=-1, keepdims=True)

    @pl.when(di == nd - 1)
    def _():
        B = dot_acc.shape[0]
        eps = jnp.float32(1e-8)                                   # F.cosine_embedding_loss eps
        nx = jnp.maximum(nx_acc[...], eps * eps)
        ny = jnp.maximum(ny_acc[...], eps * eps)
        cos = dot_acc[...] * jax.lax.rsqrt(nx * ny)               # EUP rsqrt
        loss = jnp.maximum(cos - jnp.float32(margin), jnp.float32(0.0))  # target = -1 branch
        out_ref[0, 0] = jnp.sum(loss) / B


# ---------------------------------------------------------------------------
# Wrappers (one fused pallas_call each)
# ---------------------------------------------------------------------------
@functools.partial(jax.jit, static_argnames=("threshold", "block_v"))
def fooling_logits_loss(logits, ids, *, threshold=None, block_v=None):
    B, V = logits.shape
    tv = block_v if block_v is not None else _pick_tile(V, B, logits.dtype.itemsize)
    assert V % tv == 0, "block_v must divide the vocab size"
    ids2 = ids.astype(jnp.int32).reshape(B, 1)
    out = pl.pallas_call(
        functools.partial(_logits_loss_kernel, threshold=threshold),
        out_shape=jax.ShapeDtypeStruct((1, 1), jnp.float32),
        grid=(V // tv,),
        in_specs=[
            pl.BlockSpec((B, 1), lambda v: (0, 0)),        # labels, resident across V
            pl.BlockSpec((B, tv), lambda v: (0, v)),       # streaming logits tile
        ],
        out_specs=pl.BlockSpec(memory_space=pltpu.MemorySpace.SMEM),
        scratch_shapes=[pltpu.VMEM((B, 1), jnp.float32),
                        pltpu.VMEM((B, 1), jnp.float32)],
        compiler_params=pltpu.CompilerParams(dimension_semantics=("arbitrary",)),
        cost_estimate=pl.CostEstimate(
            flops=5 * B * V, transcendentals=0,
            bytes_accessed=B * V * logits.dtype.itemsize + 4 * B + 4),
    )(ids2, logits)
    return out[0, 0]


@functools.partial(jax.jit, static_argnames=("threshold", "block_v"))
def fooling_logits_loss_rand(logits, ids, rand_cols, *, threshold=None, block_v=None):
    B, V = logits.shape
    tv = block_v if block_v is not None else _pick_tile(V, B, logits.dtype.itemsize)
    assert V % tv == 0, "block_v must divide the vocab size"
    ids2 = ids.astype(jnp.int32).reshape(B, 1)
    rnd2 = rand_cols.astype(jnp.int32).reshape(B, 1)
    out = pl.pallas_call(
        functools.partial(_logits_loss_rand_kernel, threshold=threshold),
        out_shape=jax.ShapeDtypeStruct((1, 1), jnp.float32),
        grid=(V // tv,),
        in_specs=[
            pl.BlockSpec((B, 1), lambda v: (0, 0)),
            pl.BlockSpec((B, 1), lambda v: (0, 0)),
            pl.BlockSpec((B, tv), lambda v: (0, v)),
        ],
        out_specs=pl.BlockSpec(memory_space=pltpu.MemorySpace.SMEM),
        scratch_shapes=[pltpu.VMEM((B, 1), jnp.float32),
                        pltpu.VMEM((B, 1), jnp.float32)],
        compiler_params=pltpu.CompilerParams(dimension_semantics=("arbitrary",)),
        cost_estimate=pl.CostEstimate(
            flops=5 * B * V + B * B, transcendentals=0,
            bytes_accessed=B * V * logits.dtype.itemsize + 8 * B + 4),
    )(ids2, rnd2, logits)
    return out[0, 0]


@functools.partial(jax.jit, static_argnames=("margin", "block_d"))
def fooling_cosine_loss(noised_emb, orig_emb, *, margin=0.0, block_d=None):
    B, D = noised_emb.shape
    td = block_d if block_d is not None else _pick_tile(D, B, noised_emb.dtype.itemsize)
    assert D % td == 0, "block_d must divide the embedding dim"
    out = pl.pallas_call(
        functools.partial(_cosine_loss_kernel, margin=margin),
        out_shape=jax.ShapeDtypeStruct((1, 1), jnp.float32),
        grid=(D // td,),
        in_specs=[pl.BlockSpec((B, td), lambda d: (0, d)),
                  pl.BlockSpec((B, td), lambda d: (0, d))],
        out_specs=pl.BlockSpec(memory_space=pltpu.MemorySpace.SMEM),
        scratch_shapes=[pltpu.VMEM((B, 1), jnp.float32),
                        pltpu.VMEM((B, 1), jnp.float32),
                        pltpu.VMEM((B, 1), jnp.float32)],
        compiler_params=pltpu.CompilerParams(dimension_semantics=("arbitrary",)),
        cost_estimate=pl.CostEstimate(
            flops=6 * B * D, transcendentals=B,
            bytes_accessed=2 * B * D * noised_emb.dtype.itemsize + 4),
    )(noised_emb, orig_emb)
    return out[0, 0]


class FoolingLoss:
    """Pallas/JAX port of the PyTorch FoolingLoss forward pass."""

    _VALID = ("logits loss", "logits loss rand", "embedding cosine similarity")

    def __init__(self, *, mode, threshold=None):
        if mode not in self._VALID:
            raise ValueError(f"`{mode}` isn't a valid mode")
        self.mode = mode
        self.threshold = threshold

    def __call__(self, noised_emb, orig_emb, logits, ids, *, rand_cols=None,
                 block_v=None, block_d=None, **kwargs):
        if self.mode == "embedding cosine similarity":
            margin = self.threshold if self.threshold is not None else 0.0
            return fooling_cosine_loss(noised_emb, orig_emb, margin=margin, block_d=block_d)
        if self.mode == "logits loss":
            return fooling_logits_loss(logits, ids, threshold=self.threshold, block_v=block_v)
        # 'logits loss rand'
        # TODO(synk): torch.randint inside the module has no in-kernel torch
        # equivalent; the random non-target column indices are drawn with
        # jax.random by the caller (deterministic under PRNGKey) and passed in.
        return fooling_logits_loss_rand(logits, ids, rand_cols,
                                        threshold=self.threshold, block_v=block_v)


# ---------------------------------------------------------------------------
# Main
# ---------------------------------------------------------------------------
if __name__ == "__main__":
    B, V, D = 8, 1024, 256   # batch, num_classes (lane-aligned), embedding dim

    key = jax.random.PRNGKey(0)
    k_logits, k_ids, k_emb, k_noise, k_rand = jax.random.split(key, 5)

    logits = jax.random.normal(k_logits, (B, V), jnp.float32) * 2.0
    ids = jax.random.randint(k_ids, (B,), 0, V, dtype=jnp.int32)
    orig_emb = jax.random.normal(k_emb, (B, D), jnp.float32)
    noised_emb = orig_emb + 0.1 * jax.random.normal(k_noise, (B, D), jnp.float32)

    # Random non-target column per row (mirrors torch.randint over the V-1
    # non-target columns, mapped back to the original column index).
    rand_idx = jax.random.randint(k_rand, (B,), 0, V - 1, dtype=jnp.int32)
    rand_cols = jnp.where(rand_idx < ids, rand_idx, rand_idx + 1)

    losses = {}
    m1 = FoolingLoss(mode="logits loss", threshold=1.0)
    losses["logits loss"] = m1(noised_emb, orig_emb, logits, ids, block_v=256)
    m1b = FoolingLoss(mode="logits loss", threshold=None)
    losses["logits loss (no thr)"] = m1b(noised_emb, orig_emb, logits, ids)
    m2 = FoolingLoss(mode="logits loss rand", threshold=0.5)
    losses["logits loss rand"] = m2(noised_emb, orig_emb, logits, ids,
                                    rand_cols=rand_cols, block_v=128)
    m2b = FoolingLoss(mode="logits loss rand", threshold=None)
    losses["logits loss rand (no thr)"] = m2b(noised_emb, orig_emb, logits, ids,
                                              rand_cols=rand_cols)
    m3 = FoolingLoss(mode="embedding cosine similarity", threshold=0.25)
    losses["embedding cosine similarity"] = m3(noised_emb, orig_emb, logits, ids, block_d=128)
    jax.block_until_ready(losses)

    # ---- pure-JAX references mirroring the PyTorch semantics exactly -------
    def ref_logits_loss(logits, ids, threshold):
        t = jnp.take_along_axis(logits, ids[:, None], axis=1)[:, 0]
        col = jnp.arange(V)[None, :]
        masked = jnp.where(col == ids[:, None], -jnp.inf, logits)
        max_nt = jnp.max(masked, axis=1)
        loss = -(max_nt - t)
        if threshold is not None:
            loss = jnp.maximum(loss, -threshold) + threshold
        return jnp.mean(loss)

    def ref_logits_loss_rand(logits, ids, rand_cols, threshold):
        t = jnp.take_along_axis(logits, ids[:, None], axis=1)[:, 0]       # (B,)
        r = jnp.take_along_axis(logits, rand_cols[:, None], axis=1)       # (B,1)
        loss = -(r - t)                                                   # (B,B) broadcast
        if threshold is not None:
            loss = jnp.maximum(loss, -threshold)
        return jnp.mean(loss)

    def ref_cosine(noised, orig, margin):
        dot = jnp.sum(noised * orig, axis=-1)
        cos = dot / (jnp.linalg.norm(noised, axis=-1) * jnp.linalg.norm(orig, axis=-1))
        return jnp.mean(jnp.maximum(cos - margin, 0.0))

    refs = {
        "logits loss": ref_logits_loss(logits, ids, 1.0),
        "logits loss (no thr)": ref_logits_loss(logits, ids, None),
        "logits loss rand": ref_logits_loss_rand(logits, ids, rand_cols, 0.5),
        "logits loss rand (no thr)": ref_logits_loss_rand(logits, ids, rand_cols, None),
        "embedding cosine similarity": ref_cosine(noised_emb, orig_emb, 0.25),
    }
    for name, got in losses.items():
        ref = refs[name]
        assert jnp.allclose(got, ref, rtol=2e-3, atol=2e-3), (name, float(got), float(ref))

    print("KERNEL_OK")
</pallas_src>

<mosaic_0001>
module attributes {stable_mosaic.version = 11 : i64} {
  func.func @_logits_loss_kernel(%arg0: i32, %arg1: memref<8x1xi32, #tpu.memory_space<vmem>>, %arg2: memref<8x256xf32, #tpu.memory_space<vmem>>, %arg3: memref<1x1xf32, #tpu.memory_space<smem>>, %arg4: memref<8x1xf32, #tpu.memory_space<vmem>>, %arg5: memref<8x1xf32, #tpu.memory_space<vmem>>) attributes {dimension_semantics = [#tpu.dimension_semantics<arbitrary>], iteration_bounds = array<i64: 4>, scalar_prefetch = 0 : i64, scratch_operands = 2 : i64, tpu.core_type = #tpu.core_type<tc>, window_params = [{pipeline_mode = #tpu.pipeline_mode<synchronous>, transform_indices = @transform_0, window_bounds = array<i64: 8, 1>}, {transform_indices = @transform_1, window_bounds = array<i64: 8, 256>}, {transform_indices = @transform_2, window_bounds = array<i64: 1, 1>}]} {
    %c0_i32 = arith.constant 0 : i32
    %0 = arith.cmpi eq, %arg0, %c0_i32 : i32
    %1 = arith.extui %0 : i1 to i32
    %c0_i32_0 = arith.constant 0 : i32
    %2 = arith.cmpi ne, %1, %c0_i32_0 : i32
    scf.if %2 {
      %cst_16 = arith.constant 0xFF800000 : f32
      %28 = vector.broadcast %cst_16 : f32 to vector<8x1xf32>
      %c0_17 = arith.constant 0 : index
      %c0_18 = arith.constant 0 : index
      %29 = vector.load %arg4[%c0_17, %c0_18] : memref<8x1xf32, #tpu.memory_space<vmem>>, vector<8x1xf32>
      tpu.vector_store %arg4[%c0_17, %c0_18], %28 {strides = array<i32>} : memref<8x1xf32, #tpu.memory_space<vmem>>, vector<8x1xf32>,
      %cst_19 = arith.constant 0xFF800000 : f32
      %30 = vector.broadcast %cst_19 : f32 to vector<8x1xf32>
      %c0_20 = arith.constant 0 : index
      %c0_21 = arith.constant 0 : index
      %31 = vector.load %arg5[%c0_20, %c0_21] : memref<8x1xf32, #tpu.memory_space<vmem>>, vector<8x1xf32>
      tpu.vector_store %arg5[%c0_20, %c0_21], %30 {strides = array<i32>} : memref<8x1xf32, #tpu.memory_space<vmem>>, vector<8x1xf32>,
    } else {
    }
    %c0 = arith.constant 0 : index
    %c0_1 = arith.constant 0 : index
    %3 = vector.load %arg2[%c0, %c0_1] : memref<8x256xf32, #tpu.memory_space<vmem>>, vector<8x256xf32>
    %4 = tpu.iota {dimensions = array<i32: 1>} : vector<8x256xi32>
    %c256_i32 = arith.constant 256 : i32
    %5 = arith.muli %arg0, %c256_i32 : i32
    %6 = vector.broadcast %5 : i32 to vector<8x256xi32>
    %7 = arith.addi %4, %6 : vector<8x256xi32>
    %c0_2 = arith.constant 0 : index
    %c0_3 = arith.constant 0 : index
    %8 = vector.load %arg1[%c0_2, %c0_3] : memref<8x1xi32, #tpu.memory_space<vmem>>, vector<8x1xi32>
    %9 = vector.broadcast %8 : vector<8x1xi32> to vector<8x256xi32>
    %10 = arith.cmpi eq, %7, %9 : vector<8x256xi32>
    %cst = arith.constant 0xFF800000 : f32
    %11 = vector.broadcast %cst : f32 to vector<8x256xf32>
    %12 = arith.select %10, %3, %11 : vector<8x256xi1>, vector<8x256xf32>
    %cst_4 = arith.constant dense<0xFF800000> : vector<8xf32>
    %13 = vector.multi_reduction <maximumf>, %12, %cst_4 [1] : vector<8x256xf32> to vector<8xf32>
    %14 = vector.shape_cast %13 : vector<8xf32> to vector<8x1xf32>
    %cst_5 = arith.constant 0xFF800000 : f32
    %15 = vector.broadcast %cst_5 : f32 to vector<8x256xf32>
    %16 = arith.select %10, %15, %3 : vector<8x256xi1>, vector<8x256xf32>
    %cst_6 = arith.constant dense<0xFF800000> : vector<8xf32>
    %17 = vector.multi_reduction <maximumf>, %16, %cst_6 [1] : vector<8x256xf32> to vector<8xf32>
    %18 = vector.shape_cast %17 : vector<8xf32> to vector<8x1xf32>
    %c0_7 = arith.constant 0 : index
    %c0_8 = arith.constant 0 : index
    %19 = vector.load %arg4[%c0_7, %c0_8] : memref<8x1xf32, #tpu.memory_space<vmem>>, vector<8x1xf32>
    %20 = arith.maximumf %19, %14 : vector<8x1xf32>
    %c0_9 = arith.constant 0 : index
    %c0_10 = arith.constant 0 : index
    %21 = vector.load %arg4[%c0_9, %c0_10] : memref<8x1xf32, #tpu.memory_space<vmem>>, vector<8x1xf32>
    tpu.vector_store %arg4[%c0_9, %c0_10], %20 {strides = array<i32>} : memref<8x1xf32, #tpu.memory_space<vmem>>, vector<8x1xf32>,
    %c0_11 = arith.constant 0 : index
    %c0_12 = arith.constant 0 : index
    %22 = vector.load %arg5[%c0_11, %c0_12] : memref<8x1xf32, #tpu.memory_space<vmem>>, vector<8x1xf32>
    %23 = arith.maximumf %22, %18 : vector<8x1xf32>
    %c0_13 = arith.constant 0 : index
    %c0_14 = arith.constant 0 : index
    %24 = vector.load %arg5[%c0_13, %c0_14] : memref<8x1xf32, #tpu.memory_space<vmem>>, vector<8x1xf32>
    tpu.vector_store %arg5[%c0_13, %c0_14], %23 {strides = array<i32>} : memref<8x1xf32, #tpu.memory_space<vmem>>, vector<8x1xf32>,
    %c3_i32 = arith.constant 3 : i32
    %25 = arith.cmpi eq, %arg0, %c3_i32 : i32
    %26 = arith.extui %25 : i1 to i32
    %c0_i32_15 = arith.constant 0 : i32
    %27 = arith.cmpi ne, %26, %c0_i32_15 : i32
    scf.if %27 {
      %c0_16 = arith.constant 0 : index
      %c0_17 = arith.constant 0 : index
      %28 = vector.load %arg4[%c0_16, %c0_17] : memref<8x1xf32, #tpu.memory_space<vmem>>, vector<8x1xf32>
      %c0_18 = arith.constant 0 : index
      %c0_19 = arith.constant 0 : index
      %29 = vector.load %arg5[%c0_18, %c0_19] : memref<8x1xf32, #tpu.memory_space<vmem>>, vector<8x1xf32>
      %30 = arith.subf %28, %29 : vector<8x1xf32>
      %cst_20 = arith.constant -1.000000e+00 : f32
      %31 = vector.broadcast %cst_20 : f32 to vector<8x1xf32>
      %32 = arith.maximumf %30, %31 : vector<8x1xf32>
      %cst_21 = arith.constant 1.000000e+00 : f32
      %33 = vector.broadcast %cst_21 : f32 to vector<8x1xf32>
      %34 = arith.addf %32, %33 : vector<8x1xf32>
      %35 = vector.shape_cast %34 : vector<8x1xf32> to vector<1x8x1xf32>
      %cst_22 = arith.constant dense<0.000000e+00> : vector<1xf32>
      %36 = vector.multi_reduction <add>, %35, %cst_22 [1, 2] : vector<1x8x1xf32> to vector<1xf32>
      %37 = vector.shape_cast %36 : vector<1xf32> to vector<1x1x1xf32>
      %38 = vector.extract %37[0, 0, 0] : f32 from vector<1x1x1xf32>
      %cst_23 = arith.constant 8.000000e+00 : f32
      %39 = arith.divf %38, %cst_23 : f32
      %c0_24 = arith.constant 0 : index
      %c0_25 = arith.constant 0 : index
      %40 = memref.load %arg3[%c0_24, %c0_25] : memref<1x1xf32, #tpu.memory_space<smem>>
      memref.store %39, %arg3[%c0_24, %c0_25] : memref<1x1xf32, #tpu.memory_space<smem>>
    } else {
    }
    return
  }
  func.func @transform_0(%arg0: i32) -> (i32, i32) {
    %c0_i32 = arith.constant 0 : i32
    %c0_i32_0 = arith.constant 0 : i32
    %c0_i32_1 = arith.constant 0 : i32
    return %c0_i32, %c0_i32_0 : i32, i32
  }
  func.func @transform_1(%arg0: i32) -> (i32, i32) {
    %c0_i32 = arith.constant 0 : i32
    %c0_i32_0 = arith.constant 0 : i32
    return %c0_i32, %arg0 : i32, i32
  }
  func.func @transform_2(%arg0: i32) -> (i32, i32) {
    %c0_i32 = arith.constant 0 : i32
    %c0_i32_0 = arith.constant 0 : i32
    %c0_i32_1 = arith.constant 0 : i32
    return %c0_i32, %c0_i32_0 : i32, i32
  }
}

</mosaic_0001>

<llo_original>
// kernel: fooling_logits_loss.1
$region0: #{fooling_logits_loss.1}
  #allocation0 [shape = 'u32[]', space=smem, size = 0x4, offset = 0x4, fixed_abs, tag = 'smem constant byte address 0x4 - core index']
  #allocation1 [shape = 'u32[144,128]{1,0:T(1,128)}', space=vmem, size = 0x12000, scoped, tag = 'internal scratch']
  #allocation2 [shape = 'f32[8,1]{1,0:T(8,128)}', space=vmem, size = 0x1000, scoped, tag = 'scratch operand']
  #allocation3 [shape = 'f32[8,1]{1,0:T(8,128)}', space=vmem, size = 0x1000, scoped, tag = 'scratch operand']
  %s0 = inlined_call_operand.vmem [shape: s32[8,1], index: 0, kind: input, shape index: {}]
  %s1 = inlined_call_operand.hbm [shape: f32[8,1024], index: 1, kind: input, shape index: {}]
  %s2 = inlined_call_operand.hbm [shape: f32[1,1], index: 2, kind: output, shape index: {}]
  %s3 = sld [smem:[#allocation0]]
  $region53: #{fooling_logits_loss.1} parent=0
    _
  %s5 = ssub.s32 1, %s3
  %s6 = scalar_select 0, %s5, %s3
  $region1: #{fooling_logits_loss.1} parent=0
    #allocation4 [shape = 'u8[16384]{0}', space=vmem, size = 0x4000, scoped, tag = 'input window, operand 1']
    #allocation5 [shape = 's32[2]{0}', space=sflag, size = 0x8, scoped, tag = 'scoped memory for fooling_logits_loss.1']
    #allocation6 [shape = 's32[2]{0}', space=sflag, size = 0x8, scoped, tag = 'scoped memory for fooling_logits_loss.1']
    #allocation7 [shape = 'u8[512]{0}', space=smem, size = 0x200, scoped, tag = 'output window, operand 0, single buffered']
    %7 = vsyncpa [#allocation5], 0
    %s8 = scalar_lea.sflag [#allocation5], 1
    %9 = vsyncpa %s8, 0
    %10 = vsyncpa [#allocation6], 0
    loop: start=0, step=1, limit=6
    $region2: #{fooling_logits_loss.1} parent=1 // loop_pre_header
      _
    $region3: #{fooling_logits_loss.1} parent=1 // loop_header
      %s12 = sphi 0, %s16
      %p13 = scmp.ge.s32.totalorder %s12, 6
      %s20 = sphi 0, %s20
      %s22 = sphi 0, %s20
      %s23 = sphi 0, %s22
      %s37 = sphi 0, %s23
      %s43 = sphi 0, %s45
      %s46 = sphi 0, %s43
      %s47 = sphi 0, %s46
      %s63 = sphi 0, %s47
      %s67 = sphi 0, %s67
      %s69 = sphi 0, %s67
      %s70 = sphi 0, %s69
      %s84 = sphi 0, %s70
    $region4: #{fooling_logits_loss.1} parent=1 // loop_header_branch
      %15 = sbr.rel (%p13) target = $region8
    $region5: #{fooling_logits_loss.1} parent=1 // loop_body
      %s17 = ssub.s32 %s12, 1
      %s18 = ssub.s32 %s12, 2
      %s19 = sadd.s32 %s12, 1
      %s21 = sadd.s32 %s20, 1
      %p24 = scmp.eq.s32.totalorder %s12, 3
      %p25 = scmp.ne.s32.totalorder %s20, %s22
      %p26 = scmp.eq.s32.totalorder %s12, 0
      %p27 = por %p25, %p26
      %p28 = scmp.ne.s32.totalorder %s20, %s22
      %p29 = scmp.eq.s32.totalorder %s17, 3
      %p30 = por %p28, %p29
      %p31 = scmp.ne.s32.totalorder %s22, %s23
      %p32 = scmp.eq.s32.totalorder %s17, 0
      %p33 = por %p31, %p32
      %p34 = scmp.ne.s32.totalorder %s22, %s23
      %p35 = scmp.eq.s32.totalorder %s18, 3
      %p36 = por %p34, %p35
      %p38 = scmp.ne.s32.totalorder %s23, %s37
      %p39 = scmp.eq.s32.totalorder %s18, 0
      %p40 = por %p38, %p39
      %s41 = ssub.s32 %s12, %s19
      %p42 = scmp.eq.s32.totalorder %s41, 0
      %s44 = sadd.s32 %s43, 1
      %s45 = scalar_select %p42, %s43, %s44
      %p48 = pneg %p42
      %p49 = scmp.eq.s32.totalorder %s12, 3
      %p50 = por %p48, %p49
      %p51 = scmp.ne.s32.totalorder %s43, %s46
      %p52 = scmp.eq.s32.totalorder %s12, 0
      %p53 = por %p51, %p52
      %p54 = scmp.ne.s32.totalorder %s43, %s46
      %p55 = scmp.eq.s32.totalorder %s17, 3
      %p56 = por %p54, %p55
      %p57 = scmp.ne.s32.totalorder %s46, %s47
      %p58 = scmp.eq.s32.totalorder %s17, 0
      %p59 = por %p57, %p58
      %p60 = scmp.ne.s32.totalorder %s46, %s47
      %p61 = scmp.eq.s32.totalorder %s18, 3
      %p62 = por %p60, %p61
      %p64 = scmp.ne.s32.totalorder %s47, %s63
      %p65 = scmp.eq.s32.totalorder %s18, 0
      %p66 = por %p64, %p65
      %s68 = sadd.s32 %s67, 1
      %p71 = scmp.eq.s32.totalorder %s12, 3
      %p72 = scmp.ne.s32.totalorder %s67, %s69
      %p73 = scmp.eq.s32.totalorder %s12, 0
      %p74 = por %p72, %p73
      %p75 = scmp.ne.s32.totalorder %s67, %s69
      %p76 = scmp.eq.s32.totalorder %s17, 3
      %p77 = por %p75, %p76
      %p78 = scmp.ne.s32.totalorder %s69, %s70
      %p79 = scmp.eq.s32.totalorder %s17, 0
      %p80 = por %p78, %p79
      %p81 = scmp.ne.s32.totalorder %s69, %s70
      %p82 = scmp.eq.s32.totalorder %s18, 3
      %p83 = por %p81, %p82
      %p85 = scmp.ne.s32.totalorder %s70, %s84
      %p86 = scmp.eq.s32.totalorder %s18, 0
      %p87 = por %p85, %p86
      %p88 = scmp.le.s32.totalorder 1, %s12
      %p89 = scmp.lt.s32.totalorder %s12, 5
      %p90 = pnand %p88, %p89
      %p91 = pneg %p90
      // Predicated region
      $region9: #{fooling_logits_loss.1} parent=5 // pred_check
        _
      $region10: #{fooling_logits_loss.1} parent=5 // pred_check_branch
        %93 = sbr.rel (%p90) target = $region12
      $region11: #{fooling_logits_loss.1} parent=5 // pred_region
        %s94 = ssub.s32 %s12, 1
        // Predicated region
        $region13: #{fooling_logits_loss.1} parent=11 // pred_check
          %p95 = pneg %p33
        $region14: #{fooling_logits_loss.1} parent=11 // pred_check_branch
          %97 = sbr.rel (%p95) target = $region16
        $region15: #{fooling_logits_loss.1} parent=11 // pred_region
          _
        $region16: #{fooling_logits_loss.1} parent=11 // pred_fallthru
          _
      $region12: #{fooling_logits_loss.1} parent=5 // pred_fallthru
        _
      %p98 = scmp.lt.s32.totalorder %s12, 4
      // Predicated region
      $region17: #{fooling_logits_loss.1} parent=5 // pred_check
        %p99 = pneg %p98
      $region18: #{fooling_logits_loss.1} parent=5 // pred_check_branch
        %101 = sbr.rel (%p99) target = $region20
      $region19: #{fooling_logits_loss.1} parent=5 // pred_region
        // Predicated region
        $region21: #{fooling_logits_loss.1} parent=19 // pred_check
          %p102 = pneg %p53
        $region22: #{fooling_logits_loss.1} parent=19 // pred_check_branch
          %104 = sbr.rel (%p102) target = $region24
        $region23: #{fooling_logits_loss.1} parent=19 // pred_region
          %s105 = sand.u32 %s43, 1
          %s106 = scalar_lea.sflag [#allocation5], %s105
          %s107 = sand.u32 %s43, 1
          %s108 = smul.addr %s107, 16
          %s109 = scalar_lea.vmem [#allocation4], %s108
          %s110 = smul.u32 2, %s12
          %s112 = ssub.s32 256, 256
          %113 = vsyncadd %s106, %s112
          %s114 = smul.addr %s110, 128
          %s115 = scalar_lea.hbm %s1, %s114
          %s117 = sshll.u32 %s109, 4
          %s118 = int_to_ptr.vmem [resolvable:$true] %s117
          %120 = dma.hbm_to_vmem [thread:$0]  %s115, 256, %s118, %s106
        $region24: #{fooling_logits_loss.1} parent=19 // pred_fallthru
          _
      $region20: #{fooling_logits_loss.1} parent=5 // pred_fallthru
        _
      %p121 = scmp.le.s32.totalorder 1, %s12
      %p122 = scmp.lt.s32.totalorder %s12, 5
      %p123 = pnand %p121, %p122
      %p124 = pneg %p123
      // Predicated region
      $region25: #{fooling_logits_loss.1} parent=5 // pred_check
        _
      $region26: #{fooling_logits_loss.1} parent=5 // pred_check_branch
        %126 = sbr.rel (%p123) target = $region28
      $region27: #{fooling_logits_loss.1} parent=5 // pred_region
        %s127 = ssub.s32 %s12, 1
        %s128 = sand.u32 %s46, 1
        %s129 = scalar_lea.sflag [#allocation5], %s128
        %s130 = sand.u32 %s46, 1
        %s131 = smul.addr %s130, 16
        %s132 = scalar_lea.vmem [#allocation4], %s131
        // Predicated region
        $region29: #{fooling_logits_loss.1} parent=27 // pred_check
          %p133 = pneg %p59
        $region30: #{fooling_logits_loss.1} parent=27 // pred_check_branch
          %135 = sbr.rel (%p133) target = $region32
        $region31: #{fooling_logits_loss.1} parent=27 // pred_region
          %136 = dma.done %s129, 256
        $region32: #{fooling_logits_loss.1} parent=27 // pred_fallthru
          _
        %p137 = pneg %p33
        %p138 = pneg %p30
        %s139 = sand.u32 %s46, 1
        %s140 = scalar_lea.sflag [#allocation5], %s139
        %s141 = sand.u32 %s46, 1
        %s142 = smul.addr %s141, 16
        %s143 = scalar_lea.vmem [#allocation4], %s142
        %p144 = pneg %p59
        %p145 = pneg %p56
        %p146 = pneg %p80
        %p147 = pneg %p77
        %s148 = smul.u32 2, %s17
        %p149 = scmp.eq.s32.totalorder %s17, 0
        // Predicated region
        $region33: #{fooling_logits_loss.1} parent=27 // pred_check
          %p150 = pneg %p149
        $region34: #{fooling_logits_loss.1} parent=27 // pred_check_branch
          %152 = sbr.rel (%p150) target = $region36
        $region35: #{fooling_logits_loss.1} parent=27 // pred_region
          %vm153 = vcmask 7168
          %154 = vst.msk [vmem:[#allocation2] sm:$0xff] %vm153, -inf
          %155 = vst.msk [vmem:[#allocation3] sm:$0xff] %vm153, -inf
        $region36: #{fooling_logits_loss.1} parent=27 // pred_fallthru
          _
        %v156 = vld [vmem:[%s132] sm:$0xff]
        %v157 = vld [vmem:[%s132 + $0x8] sm:$0xff]
        %v158 = vlaneseq
        %v159 = vand.u32 %v158, 127
        %v160 = vadd.s32 %v159, 128
        %s161 = smul.u32 %s17, 256
        %v162 = vstv %s161
        %v163 = vadd.s32 %v159, %v162
        %v164 = vadd.s32 %v160, %v162
        %v165 = vld [vmem:[%s0] sm:$0xff]
        %166 = vset.pattern.permute.xlu0 0
        %167 = vperm.xlu0 %166, %v165
        %v168 = vpop.permute.xlu0 %167
        %vm169 = vcmp.eq.s32.totalorder %v163, %v168
        %vm170 = vcmp.eq.s32.totalorder %v164, %v168
        %v171 = vsel %vm169, %v156, -inf
        %v172 = vsel %vm170, %v157, -inf
        %v173 = vmax.f32 %v171, %v172
        %174 = vmax.xlane.f32.xlu0 %v173
        %v175 = vpop.xlane.xlu0 %174
        %v176 = vsel %vm169, -inf, %v156
        %v177 = vsel %vm170, -inf, %v157
        %v178 = vmax.f32 %v176, %v177
        %179 = vmax.xlane.f32.xlu0 %v178
        %v180 = vpop.xlane.xlu0 %179
        %v181 = vld [vmem:[#allocation2] sm:$0xff]
        %v182 = vmax.f32 %v181, %v175
        %vm183 = vcmask 7168
        %184 = vst.msk [vmem:[#allocation2] sm:$0xff] %vm183, %v182
        %v185 = vld [vmem:[#allocation3] sm:$0xff]
        %v186 = vmax.f32 %v185, %v180
        %187 = vst.msk [vmem:[#allocation3] sm:$0xff] %vm183, %v186
        %p188 = scmp.eq.s32.totalorder %s17, 3
        // Predicated region
        $region37: #{fooling_logits_loss.1} parent=27 // pred_check
          %p189 = pneg %p188
        $region38: #{fooling_logits_loss.1} parent=27 // pred_check_branch
          %191 = sbr.rel (%p189) target = $region40
        $region39: #{fooling_logits_loss.1} parent=27 // pred_region
          %v192 = vld [vmem:[#allocation2] sm:$0xff]
          %v193 = vld [vmem:[#allocation3] sm:$0xff]
          %v194 = vsub.f32 %v192, %v193
          %v195 = vmax.f32 %v194, -1.0
          %v196 = vadd.f32 %v195, 1.0
          %v197 = vsel %vm183, %v196, 0.0
          %198 = vadd.xlane.f32.xlu0 %v197
          %v199 = vpop.xlane.xlu0 %198
          %v200 = vrot.slane %v199, 4
          %v201 = vadd.f32 %v199, %v200
          %v202 = vrot.slane %v201, 2
          %v203 = vadd.f32 %v201, %v202
          %v204 = vrot.slane %v203, 1
          %v205 = vadd.f32 %v203, %v204
          %s206 = vtos %v205
          %v207 = vrcp.pop 8.0
          %s208 = vtos %v207
          %s209 = smul.f32 %s206, %s208
          %s210 = scalar_lea.smem [#allocation7], 0
          %211 = sst [smem:[%s210]] %s209
        $region40: #{fooling_logits_loss.1} parent=27 // pred_fallthru
          _
        // Predicated region
        $region41: #{fooling_logits_loss.1} parent=27 // pred_check
          %p212 = pneg %p77
        $region42: #{fooling_logits_loss.1} parent=27 // pred_check_branch
          %214 = sbr.rel (%p212) target = $region44
        $region43: #{fooling_logits_loss.1} parent=27 // pred_region
          %s216 = ssub.s32 16, 16
          %217 = vsyncadd [#allocation6], %s216
          %220 = dma.smem_to_hbm [#allocation7], 16, %s2, [#allocation6]
        $region44: #{fooling_logits_loss.1} parent=27 // pred_fallthru
          _
        // Predicated region
        $region45: #{fooling_logits_loss.1} parent=27 // pred_check
          %p221 = pneg %p77
        $region46: #{fooling_logits_loss.1} parent=27 // pred_check_branch
          %223 = sbr.rel (%p221) target = $region48
        $region47: #{fooling_logits_loss.1} parent=27 // pred_region
          %224 = dma.done [#allocation6], 16
        $region48: #{fooling_logits_loss.1} parent=27 // pred_fallthru
          _
        %225 = sfence
      $region28: #{fooling_logits_loss.1} parent=5 // pred_fallthru
        _
      %p226 = scmp.le.s32.totalorder 2, %s12
      // Predicated region
      $region49: #{fooling_logits_loss.1} parent=5 // pred_check
        %p227 = pneg %p226
      $region50: #{fooling_logits_loss.1} parent=5 // pred_check_branch
        %229 = sbr.rel (%p227) target = $region52
      $region51: #{fooling_logits_loss.1} parent=5 // pred_region
        %s230 = ssub.s32 %s12, 2
      $region52: #{fooling_logits_loss.1} parent=5 // pred_fallthru
        _
    $region6: #{fooling_logits_loss.1} parent=1 // loop_footer
      %s16 = sadd.s32 1, %s12
    $region7: #{fooling_logits_loss.1} parent=1 // loop_footer_branch
      %11 = sbr.rel target = $region3
    $region8: #{fooling_logits_loss.1} parent=1 // loop_exit
      _
    %231 = vsyncpa [#allocation5], 1
    %s232 = scalar_lea.sflag [#allocation5], 1
    %233 = vsyncpa %s232, 1
    %234 = vsyncpa [#allocation6], 1
    %s235 = scalar_lea.sflag [#allocation6], 1
    %236 = vsyncpa %s235, 1

</llo_original>
